<compile_context>
chip_gen: v7x
topology: tpu7x:2x2x1
jax: 0.10.0
libtpu: 0.0.40
codegen_flags: <defaults>
</compile_context>

<pallas_src>
import jax
import jax.numpy as jnp
from jax.experimental import pallas as pl
from jax.experimental.pallas import tpu as pltpu


def _round_up(x, m):
    return ((x + m - 1) // m) * m


def input_attention_kernel(emb_ref, hid_ref, enc_ref,
                           watt_e_ref, watt_h_ref, batt_ref,
                           wproj_e_ref, wproj_c_ref, bproj_ref,
                           out_ref):
    emb = emb_ref[...]                                    # (Bt, E)  matmul dtype
    hid = hid_ref[...]                                    # (Bt, H)

    # Attention-independent half of the projection, hoisted above the softmax
    # so its MXU work overlaps the EUP (exp/recip) and VPU softmax work.
    proj_emb = jnp.dot(emb, wproj_e_ref[...],
                       preferred_element_type=jnp.float32)          # (Bt, E)

    # attention = Linear(cat([embedded, hidden])) with pre-split weights:
    # two accumulating MXU dots, no lane-axis concatenation / relayout.
    att = (jnp.dot(emb, watt_e_ref[...], preferred_element_type=jnp.float32)
           + jnp.dot(hid, watt_h_ref[...], preferred_element_type=jnp.float32)
           + batt_ref[...])                                         # (Bt, L) f32

    # Numerically stable softmax over the last dim (f32 elementwise math).
    att = att - jnp.max(att, axis=-1, keepdims=True)
    e = jnp.exp(att)
    s = jnp.sum(e, axis=-1, keepdims=True)
    inv = pl.reciprocal(s, approx=True)        # EUP slot instead of VPU divide
    inv = inv * (2.0 - s * inv)                # one Newton step -> ~f32 exact
    w = e * inv                                # (Bt, L) attention weights

    # bmm((Bt,1,L), (Bt,L,C)) -> (Bt,1,C): batched contraction (MXU friendly),
    # no (Bt,L,C) broadcast intermediate nor cross-sublane VPU/XLU reduction.
    enc = enc_ref[...]                                              # (Bt, L, C)
    weighted = jnp.einsum('bql,blc->bqc',
                          w[:, None, :].astype(enc.dtype), enc,
                          preferred_element_type=jnp.float32)[:, 0, :]  # (Bt,C)

    proj = (proj_emb
            + jnp.dot(weighted.astype(wproj_c_ref.dtype), wproj_c_ref[...],
                      preferred_element_type=jnp.float32)
            + bproj_ref[...])                                       # (Bt, E)

    # Single lane-dense packed output slab: [attw | proj | zero pad].
    bt = out_ref.shape[0]
    pad = out_ref.shape[1] - w.shape[1] - proj.shape[1]
    parts = [w, proj]
    if pad > 0:
        parts.append(jnp.zeros((bt, pad), jnp.float32))
    out_ref[...] = jnp.concatenate(parts, axis=-1)


def input_attention(hidden_state, embedded, encoder_outputs, params,
                    *, matmul_dtype=jnp.float32, batch_block=128):
    """hidden_state: tuple whose [0] has shape (1, B, H); embedded: (1, B, E);
    encoder_outputs: (B, L, C).  params holds the two Linear layers with
    weights pre-transposed to (in, out):
        w_att (E+H, L), b_att (1, L), w_proj (E+C, E), b_proj (1, E).
    Returns (attention_weights (1, B, L), projected_rnn_inputs (1, B, E)).

    matmul_dtype: dtype of MXU-facing operands (use jnp.bfloat16 on v6e/v7x);
    biases, softmax and accumulation always stay float32 (v5e-safe)."""
    h0 = hidden_state[0]
    T, B, H = h0.shape
    _, _, E = embedded.shape
    Be, L, C = encoder_outputs.shape
    assert T == 1, "single decoder step expected"
    assert Be == B

    emb2 = embedded.reshape(B, E).astype(matmul_dtype)
    hid2 = h0.reshape(B, H).astype(matmul_dtype)
    enc = encoder_outputs.astype(matmul_dtype)

    # Split the Linear weights so the kernel never concatenates on the lane axis.
    w_att_e = params["w_att"][:E].astype(matmul_dtype)     # (E, L)
    w_att_h = params["w_att"][E:].astype(matmul_dtype)     # (H, L)
    w_proj_e = params["w_proj"][:E].astype(matmul_dtype)   # (E, E)
    w_proj_c = params["w_proj"][E:].astype(matmul_dtype)   # (C, E)
    b_att = params["b_att"].reshape(1, L).astype(jnp.float32)
    b_proj = params["b_proj"].reshape(1, E).astype(jnp.float32)

    # TODO(synk): in a real decode loop, hoist enc @ w_proj_c (constant per
    # sequence) out of the per-step call, and for very large L tile L on the
    # grid with an online-softmax accumulation so it fits v7x's 64 MiB VMEM.

    bb = min(B, batch_block)              # rows per grid step
    grid = (pl.cdiv(B, bb),)
    out_w = _round_up(L + E, 128)         # lane-dense packed output slab width

    row2 = lambda i: (i, 0)
    row3 = lambda i: (i, 0, 0)
    rep2 = lambda i: (0, 0)               # weights: same block every step

    out = pl.pallas_call(
        input_attention_kernel,
        out_shape=jax.ShapeDtypeStruct((B, out_w), jnp.float32),
        grid_spec=pltpu.PrefetchScalarGridSpec(
            num_scalar_prefetch=0,
            grid=grid,
            in_specs=[
                pl.BlockSpec((bb, E), row2),          # embedded
                pl.BlockSpec((bb, H), row2),          # hidden_state[0]
                pl.BlockSpec((bb, L, C), row3),       # encoder_outputs
                pl.BlockSpec((E, L), rep2),           # w_att (embed half)
                pl.BlockSpec((H, L), rep2),           # w_att (hidden half)
                pl.BlockSpec((1, L), rep2),           # b_att
                pl.BlockSpec((E, E), rep2),           # w_proj (embed half)
                pl.BlockSpec((C, E), rep2),           # w_proj (context half)
                pl.BlockSpec((1, E), rep2),           # b_proj
            ],
            out_specs=pl.BlockSpec((bb, out_w), row2),
        ),
        compiler_params=pltpu.CompilerParams(
            dimension_semantics=("parallel",)),       # both TCs on v7x
    )(emb2, hid2, enc, w_att_e, w_att_h, b_att, w_proj_e, w_proj_c, b_proj)

    attw = out[:, :L].reshape(1, B, L)
    proj = out[:, L:L + E].reshape(1, B, E)
    return attw, proj


def _reference(hidden_state, embedded, encoder_outputs, params):
    """Pure-JAX transcription of the PyTorch forward."""
    h0 = hidden_state[0]
    att_in = jnp.concatenate([embedded, h0], axis=-1)            # (1,B,E+H)
    att = att_in @ params["w_att"] + params["b_att"][0]          # (1,B,L)
    w = jax.nn.softmax(att, axis=-1)                             # (1,B,L)
    tw = jnp.transpose(w, (1, 0, 2))                             # (B,1,L)
    ws = jnp.einsum('btl,blc->btc', tw, encoder_outputs)         # (B,1,C)
    ss = jnp.transpose(ws, (1, 0, 2))                            # (1,B,C)
    proj = jnp.concatenate([embedded, ss], axis=-1) @ params["w_proj"] \
        + params["b_proj"][0]                                    # (1,B,E)
    return w, proj


if __name__ == "__main__":
    # hps: embed_size=32, hidden_size=32, attention_len=8, encoder_out_size=32
    B, E, H, L, C = 2, 32, 32, 8, 32

    key = jax.random.PRNGKey(0)
    k1, k2, k3, k4, k5, k6, k7, k8 = jax.random.split(key, 8)

    embedded = jax.random.normal(k1, (1, B, E), jnp.float32)
    h0 = jax.random.normal(k2, (1, B, H), jnp.float32)
    c0 = jax.random.normal(k3, (1, B, H), jnp.float32)   # unused cell state
    encoder_outputs = jax.random.normal(k4, (B, L, C), jnp.float32)

    # PyTorch Linear stores (out, in); keep pre-transposed as (in, out).
    params = {
        "w_att":  0.1 * jax.random.normal(k5, (E + H, L), jnp.float32),
        "b_att":  0.1 * jax.random.normal(k6, (1, L), jnp.float32),
        "w_proj": 0.1 * jax.random.normal(k7, (E + C, E), jnp.float32),
        "b_proj": 0.1 * jax.random.normal(k8, (1, E), jnp.float32),
    }

    attw, proj = input_attention((h0, c0), embedded, encoder_outputs, params)
    jax.block_until_ready((attw, proj))

    attw_ref, proj_ref = _reference((h0, c0), embedded, encoder_outputs, params)
    assert attw.shape == (1, B, L) and proj.shape == (1, B, E)
    assert jnp.allclose(attw, attw_ref, atol=1e-4, rtol=1e-4)
    assert jnp.allclose(proj, proj_ref, atol=1e-4, rtol=1e-4)

    print("KERNEL_OK")
</pallas_src>

<mosaic_0001>
module attributes {stable_mosaic.version = 11 : i64} {
  func.func @input_attention_kernel(%arg0: i32, %arg1: memref<2x32xf32, #tpu.memory_space<vmem>>, %arg2: memref<2x32xf32, #tpu.memory_space<vmem>>, %arg3: memref<2x8x32xf32, #tpu.memory_space<vmem>>, %arg4: memref<32x8xf32, #tpu.memory_space<vmem>>, %arg5: memref<32x8xf32, #tpu.memory_space<vmem>>, %arg6: memref<1x8xf32, #tpu.memory_space<vmem>>, %arg7: memref<32x32xf32, #tpu.memory_space<vmem>>, %arg8: memref<32x32xf32, #tpu.memory_space<vmem>>, %arg9: memref<1x32xf32, #tpu.memory_space<vmem>>, %arg10: memref<2x128xf32, #tpu.memory_space<vmem>>) attributes {dimension_semantics = [#tpu.dimension_semantics<parallel>], iteration_bounds = array<i64: 1>, scalar_prefetch = 0 : i64, scratch_operands = 0 : i64, tpu.core_type = #tpu.core_type<tc>, window_params = [{transform_indices = @transform_0, window_bounds = array<i64: 2, 32>}, {transform_indices = @transform_1, window_bounds = array<i64: 2, 32>}, {transform_indices = @transform_2, window_bounds = array<i64: 2, 8, 32>}, {pipeline_mode = #tpu.pipeline_mode<synchronous>, transform_indices = @transform_3, window_bounds = array<i64: 32, 8>}, {pipeline_mode = #tpu.pipeline_mode<synchronous>, transform_indices = @transform_4, window_bounds = array<i64: 32, 8>}, {pipeline_mode = #tpu.pipeline_mode<synchronous>, transform_indices = @transform_5, window_bounds = array<i64: 1, 8>}, {pipeline_mode = #tpu.pipeline_mode<synchronous>, transform_indices = @transform_6, window_bounds = array<i64: 32, 32>}, {pipeline_mode = #tpu.pipeline_mode<synchronous>, transform_indices = @transform_7, window_bounds = array<i64: 32, 32>}, {pipeline_mode = #tpu.pipeline_mode<synchronous>, transform_indices = @transform_8, window_bounds = array<i64: 1, 32>}, {transform_indices = @transform_9, window_bounds = array<i64: 2, 128>}]} {
    %c0 = arith.constant 0 : index
    %c0_0 = arith.constant 0 : index
    %0 = vector.load %arg1[%c0, %c0_0] : memref<2x32xf32, #tpu.memory_space<vmem>>, vector<2x32xf32>
    %c0_1 = arith.constant 0 : index
    %c0_2 = arith.constant 0 : index
    %1 = vector.load %arg2[%c0_1, %c0_2] : memref<2x32xf32, #tpu.memory_space<vmem>>, vector<2x32xf32>
    %c0_3 = arith.constant 0 : index
    %c0_4 = arith.constant 0 : index
    %2 = vector.load %arg7[%c0_3, %c0_4] : memref<32x32xf32, #tpu.memory_space<vmem>>, vector<32x32xf32>
    %cst = arith.constant dense<0.000000e+00> : vector<2x32xf32>
    %3 = tpu.matmul %0, %2, %cst {dimension_numbers = #tpu.dot_dimension_numbers<[1], [0], [0], [1], [0, 0, 1, 1], [], []>} : vector<2x32xf32>, vector<32x32xf32>, vector<2x32xf32> -> vector<2x32xf32>
    %c0_5 = arith.constant 0 : index
    %c0_6 = arith.constant 0 : index
    %4 = vector.load %arg4[%c0_5, %c0_6] : memref<32x8xf32, #tpu.memory_space<vmem>>, vector<32x8xf32>
    %cst_7 = arith.constant dense<0.000000e+00> : vector<2x8xf32>
    %5 = tpu.matmul %0, %4, %cst_7 {dimension_numbers = #tpu.dot_dimension_numbers<[1], [0], [0], [1], [0, 0, 1, 1], [], []>} : vector<2x32xf32>, vector<32x8xf32>, vector<2x8xf32> -> vector<2x8xf32>
    %c0_8 = arith.constant 0 : index
    %c0_9 = arith.constant 0 : index
    %6 = vector.load %arg5[%c0_8, %c0_9] : memref<32x8xf32, #tpu.memory_space<vmem>>, vector<32x8xf32>
    %cst_10 = arith.constant dense<0.000000e+00> : vector<2x8xf32>
    %7 = tpu.matmul %1, %6, %cst_10 {dimension_numbers = #tpu.dot_dimension_numbers<[1], [0], [0], [1], [0, 0, 1, 1], [], []>} : vector<2x32xf32>, vector<32x8xf32>, vector<2x8xf32> -> vector<2x8xf32>
    %8 = arith.addf %5, %7 : vector<2x8xf32>
    %c0_11 = arith.constant 0 : index
    %c0_12 = arith.constant 0 : index
    %9 = vector.load %arg6[%c0_11, %c0_12] : memref<1x8xf32, #tpu.memory_space<vmem>>, vector<1x8xf32>
    %10 = vector.broadcast %9 : vector<1x8xf32> to vector<2x8xf32>
    %11 = arith.addf %8, %10 : vector<2x8xf32>
    %cst_13 = arith.constant dense<0xFF800000> : vector<2xf32>
    %12 = vector.multi_reduction <maximumf>, %11, %cst_13 [1] : vector<2x8xf32> to vector<2xf32>
    %13 = vector.shape_cast %12 : vector<2xf32> to vector<2x1xf32>
    %14 = vector.broadcast %13 : vector<2x1xf32> to vector<2x8xf32>
    %15 = arith.subf %11, %14 : vector<2x8xf32>
    %16 = math.exp %15 : vector<2x8xf32>
    %cst_14 = arith.constant dense<0.000000e+00> : vector<2xf32>
    %17 = vector.multi_reduction <add>, %16, %cst_14 [1] : vector<2x8xf32> to vector<2xf32>
    %18 = vector.shape_cast %17 : vector<2xf32> to vector<2x1xf32>
    %19 = tpu.reciprocal %18 {approx = true} : vector<2x1xf32> -> vector<2x1xf32>
    %20 = arith.mulf %18, %19 : vector<2x1xf32>
    %cst_15 = arith.constant 2.000000e+00 : f32
    %21 = vector.broadcast %cst_15 : f32 to vector<2x1xf32>
    %22 = arith.subf %21, %20 : vector<2x1xf32>
    %23 = arith.mulf %19, %22 : vector<2x1xf32>
    %24 = vector.broadcast %23 : vector<2x1xf32> to vector<2x8xf32>
    %25 = arith.mulf %16, %24 : vector<2x8xf32>
    %c0_16 = arith.constant 0 : index
    %c0_17 = arith.constant 0 : index
    %c0_18 = arith.constant 0 : index
    %26 = vector.load %arg3[%c0_16, %c0_17, %c0_18] : memref<2x8x32xf32, #tpu.memory_space<vmem>>, vector<2x8x32xf32>
    %27 = vector.shape_cast %25 : vector<2x8xf32> to vector<2x1x8xf32>
    "tpu.trace_start"() <{level = 10 : i32, message = "bql,blc->bqc"}> : () -> ()
    %cst_19 = arith.constant dense<0.000000e+00> : vector<2x1x32xf32>
    %28 = tpu.matmul %27, %26, %cst_19 {dimension_numbers = #tpu.dot_dimension_numbers<[2], [1], [1], [2], [0, 0, 0, 1, 1, 2], [0], [0]>} : vector<2x1x8xf32>, vector<2x8x32xf32>, vector<2x1x32xf32> -> vector<2x1x32xf32>
    "tpu.trace_stop"() : () -> ()
    %29 = vector.shape_cast %28 : vector<2x1x32xf32> to vector<2x32xf32>
    %c0_20 = arith.constant 0 : index
    %c0_21 = arith.constant 0 : index
    %30 = vector.load %arg8[%c0_20, %c0_21] : memref<32x32xf32, #tpu.memory_space<vmem>>, vector<32x32xf32>
    %cst_22 = arith.constant dense<0.000000e+00> : vector<2x32xf32>
    %31 = tpu.matmul %29, %30, %cst_22 {dimension_numbers = #tpu.dot_dimension_numbers<[1], [0], [0], [1], [0, 0, 1, 1], [], []>} : vector<2x32xf32>, vector<32x32xf32>, vector<2x32xf32> -> vector<2x32xf32>
    %32 = arith.addf %3, %31 : vector<2x32xf32>
    %c0_23 = arith.constant 0 : index
    %c0_24 = arith.constant 0 : index
    %33 = vector.load %arg9[%c0_23, %c0_24] : memref<1x32xf32, #tpu.memory_space<vmem>>, vector<1x32xf32>
    %34 = vector.broadcast %33 : vector<1x32xf32> to vector<2x32xf32>
    %35 = arith.addf %32, %34 : vector<2x32xf32>
    %cst_25 = arith.constant 0.000000e+00 : f32
    %36 = vector.broadcast %cst_25 : f32 to vector<2x88xf32>
    %37 = tpu.concatenate %25, %35, %36 in 1 : vector<2x8xf32>, vector<2x32xf32>, vector<2x88xf32> -> vector<2x128xf32>
    %c0_26 = arith.constant 0 : index
    %c0_27 = arith.constant 0 : index
    %38 = vector.load %arg10[%c0_26, %c0_27] : memref<2x128xf32, #tpu.memory_space<vmem>>, vector<2x128xf32>
    tpu.vector_store %arg10[%c0_26, %c0_27], %37 {strides = array<i32>} : memref<2x128xf32, #tpu.memory_space<vmem>>, vector<2x128xf32>,
    return
  }
  func.func @transform_0(%arg0: i32) -> (i32, i32) {
    %c0_i32 = arith.constant 0 : i32
    %c0_i32_0 = arith.constant 0 : i32
    return %arg0, %c0_i32 : i32, i32
  }
  func.func @transform_1(%arg0: i32) -> (i32, i32) {
    %c0_i32 = arith.constant 0 : i32
    %c0_i32_0 = arith.constant 0 : i32
    return %arg0, %c0_i32 : i32, i32
  }
  func.func @transform_2(%arg0: i32) -> (i32, i32, i32) {
    %c0_i32 = arith.constant 0 : i32
    %c0_i32_0 = arith.constant 0 : i32
    %c0_i32_1 = arith.constant 0 : i32
    return %arg0, %c0_i32, %c0_i32_0 : i32, i32, i32
  }
  func.func @transform_3(%arg0: i32) -> (i32, i32) {
    %c0_i32 = arith.constant 0 : i32
    %c0_i32_0 = arith.constant 0 : i32
    %c0_i32_1 = arith.constant 0 : i32
    return %c0_i32, %c0_i32_0 : i32, i32
  }
  func.func @transform_4(%arg0: i32) -> (i32, i32) {
    %c0_i32 = arith.constant 0 : i32
    %c0_i32_0 = arith.constant 0 : i32
    %c0_i32_1 = arith.constant 0 : i32
    return %c0_i32, %c0_i32_0 : i32, i32
  }
  func.func @transform_5(%arg0: i32) -> (i32, i32) {
    %c0_i32 = arith.constant 0 : i32
    %c0_i32_0 = arith.constant 0 : i32
    %c0_i32_1 = arith.constant 0 : i32
    return %c0_i32, %c0_i32_0 : i32, i32
  }
  func.func @transform_6(%arg0: i32) -> (i32, i32) {
    %c0_i32 = arith.constant 0 : i32
    %c0_i32_0 = arith.constant 0 : i32
    %c0_i32_1 = arith.constant 0 : i32
    return %c0_i32, %c0_i32_0 : i32, i32
  }
  func.func @transform_7(%arg0: i32) -> (i32, i32) {
    %c0_i32 = arith.constant 0 : i32
    %c0_i32_0 = arith.constant 0 : i32
    %c0_i32_1 = arith.constant 0 : i32
    return %c0_i32, %c0_i32_0 : i32, i32
  }
  func.func @transform_8(%arg0: i32) -> (i32, i32) {
    %c0_i32 = arith.constant 0 : i32
    %c0_i32_0 = arith.constant 0 : i32
    %c0_i32_1 = arith.constant 0 : i32
    return %c0_i32, %c0_i32_0 : i32, i32
  }
  func.func @transform_9(%arg0: i32) -> (i32, i32) {
    %c0_i32 = arith.constant 0 : i32
    %c0_i32_0 = arith.constant 0 : i32
    return %arg0, %c0_i32 : i32, i32
  }
}

</mosaic_0001>

<llo_original>
// kernel: tpu_custom_call.1
$region0: #{tpu_custom_call.1}
  #allocation0 [shape = 'u32[]', space=smem, size = 0x4, offset = 0x4, fixed_abs, tag = 'smem constant byte address 0x4 - core index']
  #allocation1 [shape = 'u32[144,128]{1,0:T(1,128)}', space=vmem, size = 0x12000, scoped, tag = 'internal scratch']
  %s0 = inlined_call_operand.hbm [shape: f32[2,32], index: 0, kind: input, shape index: {}]
  %s1 = inlined_call_operand.vmem [shape: f32[2,32], index: 1, kind: input, shape index: {}]
  %s2 = inlined_call_operand.vmem [shape: f32[2,8,32], index: 2, kind: input, shape index: {}]
  %s3 = inlined_call_operand.vmem [shape: f32[32,8], index: 3, kind: input, shape index: {}]
  %s4 = inlined_call_operand.vmem [shape: f32[32,8], index: 4, kind: input, shape index: {}]
  %s5 = inlined_call_operand.vmem [shape: f32[1,8], index: 5, kind: input, shape index: {}]
  %s6 = inlined_call_operand.vmem [shape: f32[32,32], index: 6, kind: input, shape index: {}]
  %s7 = inlined_call_operand.vmem [shape: f32[32,32], index: 7, kind: input, shape index: {}]
  %s8 = inlined_call_operand.vmem [shape: f32[1,32], index: 8, kind: input, shape index: {}]
  %s9 = inlined_call_operand.hbm [shape: f32[2,128], index: 9, kind: output, shape index: {}]
  %s10 = sld [smem:[#allocation0]]
  $region50: #{tpu_custom_call.1} parent=0
    _
  %s12 = ssub.s32 1, %s10
  %s13 = scalar_select 0, %s12, %s10
  $region1: #{tpu_custom_call.1} parent=0
    #allocation2 [shape = 'u8[1024]{0}', space=vmem, size = 0x400, scoped, tag = 'input window, operand 0, single buffered']
    #allocation3 [shape = 's32[1]{0}', space=sflag, size = 0x4, scoped, tag = 'scoped memory for tpu_custom_call.1']
    #allocation4 [shape = 's32[1]{0}', space=sflag, size = 0x4, scoped, tag = 'scoped memory for tpu_custom_call.1']
    #allocation5 [shape = 'u8[1024]{0}', space=vmem, size = 0x400, scoped, tag = 'output window, operand 0, single buffered']
    %14 = vsyncpa [#allocation3], 0
    %15 = vsyncpa [#allocation4], 0
    // Predicated region
    $region2: #{tpu_custom_call.1} parent=1 // pred_check
      _
    $region3: #{tpu_custom_call.1} parent=1 // pred_check_branch
      %17 = sbr.rel (0) target = $region5
    $region4: #{tpu_custom_call.1} parent=1 // pred_region
      %s19 = ssub.s32 32, 32
      %20 = vsyncadd [#allocation3], %s19
      %s22 = sshll.u32 [#allocation2], 4
      %s23 = int_to_ptr.vmem [resolvable:$true] %s22
      %25 = dma.hbm_to_vmem [thread:$0]  %s0, 32, %s23, [#allocation3]
    $region5: #{tpu_custom_call.1} parent=1 // pred_fallthru
      _
    // Predicated region
    $region6: #{tpu_custom_call.1} parent=1 // pred_check
      _
    $region7: #{tpu_custom_call.1} parent=1 // pred_check_branch
      %27 = sbr.rel (0) target = $region9
    $region8: #{tpu_custom_call.1} parent=1 // pred_region
      _
    $region9: #{tpu_custom_call.1} parent=1 // pred_fallthru
      _
    // Predicated region
    $region10: #{tpu_custom_call.1} parent=1 // pred_check
      _
    $region11: #{tpu_custom_call.1} parent=1 // pred_check_branch
      %29 = sbr.rel (0) target = $region13
    $region12: #{tpu_custom_call.1} parent=1 // pred_region
      _
    $region13: #{tpu_custom_call.1} parent=1 // pred_fallthru
      _
    // Predicated region
    $region14: #{tpu_custom_call.1} parent=1 // pred_check
      _
    $region15: #{tpu_custom_call.1} parent=1 // pred_check_branch
      %31 = sbr.rel (0) target = $region17
    $region16: #{tpu_custom_call.1} parent=1 // pred_region
      _
    $region17: #{tpu_custom_call.1} parent=1 // pred_fallthru
      _
    // Predicated region
    $region18: #{tpu_custom_call.1} parent=1 // pred_check
      _
    $region19: #{tpu_custom_call.1} parent=1 // pred_check_branch
      %33 = sbr.rel (0) target = $region21
    $region20: #{tpu_custom_call.1} parent=1 // pred_region
      _
    $region21: #{tpu_custom_call.1} parent=1 // pred_fallthru
      _
    // Predicated region
    $region22: #{tpu_custom_call.1} parent=1 // pred_check
      _
    $region23: #{tpu_custom_call.1} parent=1 // pred_check_branch
      %35 = sbr.rel (0) target = $region25
    $region24: #{tpu_custom_call.1} parent=1 // pred_region
      _
    $region25: #{tpu_custom_call.1} parent=1 // pred_fallthru
      _
    // Predicated region
    $region26: #{tpu_custom_call.1} parent=1 // pred_check
      _
    $region27: #{tpu_custom_call.1} parent=1 // pred_check_branch
      %37 = sbr.rel (0) target = $region29
    $region28: #{tpu_custom_call.1} parent=1 // pred_region
      _
    $region29: #{tpu_custom_call.1} parent=1 // pred_fallthru
      _
    // Predicated region
    $region30: #{tpu_custom_call.1} parent=1 // pred_check
      _
    $region31: #{tpu_custom_call.1} parent=1 // pred_check_branch
      %39 = sbr.rel (0) target = $region33
    $region32: #{tpu_custom_call.1} parent=1 // pred_region
      _
    $region33: #{tpu_custom_call.1} parent=1 // pred_fallthru
      _
    // Predicated region
    $region34: #{tpu_custom_call.1} parent=1 // pred_check
      _
    $region35: #{tpu_custom_call.1} parent=1 // pred_check_branch
      %41 = sbr.rel (0) target = $region37
    $region36: #{tpu_custom_call.1} parent=1 // pred_region
      _
    $region37: #{tpu_custom_call.1} parent=1 // pred_fallthru
      _
    // Predicated region
    $region38: #{tpu_custom_call.1} parent=1 // pred_check
      _
    $region39: #{tpu_custom_call.1} parent=1 // pred_check_branch
      %43 = sbr.rel (0) target = $region41
    $region40: #{tpu_custom_call.1} parent=1 // pred_region
      %44 = dma.done [#allocation3], 32
    $region41: #{tpu_custom_call.1} parent=1 // pred_fallthru
      _
    %v45 = vld [vmem:[#allocation2] sm:$0x3]
    %v46 = vld [vmem:[%s1] sm:$0x3]
    %v47 = vld [vmem:[%s6] sm:$0xff]
    %v48 = vld [vmem:[%s6 + $0x8] sm:$0xff]
    %v49 = vld [vmem:[%s6 + $0x10] sm:$0xff]
    %v50 = vld [vmem:[%s6 + $0x18] sm:$0xff]
    %v51 = vld [vmem:[%s3] sm:$0xff]
    %v52 = vld [vmem:[%s3 + $0x8] sm:$0xff]
    %v53 = vld [vmem:[%s3 + $0x10] sm:$0xff]
    %v54 = vld [vmem:[%s3 + $0x18] sm:$0xff]
    %v55 = vld [vmem:[%s4] sm:$0xff]
    %v56 = vld [vmem:[%s4 + $0x8] sm:$0xff]
    %v57 = vld [vmem:[%s4 + $0x10] sm:$0xff]
    %v58 = vld [vmem:[%s4 + $0x18] sm:$0xff]
    %vm59 = vcmask 261120
    %v61 = vsel %vm59, %v46, 0
    %63 = vmatprep.subr.mxu0 0.0
    %64 = vmatpush1.msra.mxu0 %v55
    %65 = vmatprep.subr.mxu0 0.0
    %66 = vmatpush1.msra.mxu0 %v56
    %67 = vmatprep.subr.mxu0 0.0
    %68 = vmatpush1.msra.mxu0 %v57
    %69 = vmatprep.subr.mxu0 0.0
    %70 = vmatpush1.msra.mxu0 %v58
    %71 = vmatprep.subr.mxu0 0.0
    %72 = vmatpush1.msra.mxu0 0.0
    %73 = vmatprep.subr.mxu0 0.0
    %74 = vmatpush1.msra.mxu0 0.0
    %75 = vmatprep.subr.mxu0 0.0
    %76 = vmatpush1.msra.mxu0 0.0
    %77 = vmatprep.subr.mxu0 0.0
    %78 = vmatpush1.msra.mxu0 0.0
    %79 = vmatprep.subr.mxu0 0.0
    %80 = vmatpush1.msra.mxu0 0.0
    %81 = vmatprep.subr.mxu0 0.0
    %82 = vmatpush1.msra.mxu0 0.0
    %83 = vmatprep.subr.mxu0 0.0
    %84 = vmatpush1.msra.mxu0 0.0
    %85 = vmatprep.subr.mxu0 0.0
    %86 = vmatpush1.msra.mxu0 0.0
    %87 = vmatprep.subr.mxu0 0.0
    %88 = vmatpush1.msra.mxu0 0.0
    %89 = vmatprep.subr.mxu0 0.0
    %90 = vmatpush1.msra.mxu0 0.0
    %91 = vmatprep.subr.mxu0 0.0
    %92 = vmatpush1.msra.mxu0 0.0
    %93 = vmatprep.subr.mxu0 0.0
    %94 = vmatpush1.msra.mxu0 0.0
    %95 = vmatprep.subr.mxu0 0.0
    %96 = vmatpush1.msra.mxu0 0.0
    %97 = vmatprep.subr.mxu0 0.0
    %98 = vmatpush1.msra.mxu0 0.0
    %99 = vmatprep.subr.mxu0 0.0
    %100 = vmatpush1.msra.mxu0 0.0
    %101 = vmatprep.subr.mxu0 0.0
    %102 = vmatpush1.msra.mxu0 0.0
    %103 = vmatprep.subr.mxu0 0.0
    %104 = vmatpush1.msra.mxu0 0.0
    %105 = vmatprep.subr.mxu0 0.0
    %106 = vmatpush1.msra.mxu0 0.0
    %107 = vmatprep.subr.mxu0 0.0
    %108 = vmatpush1.msra.mxu0 0.0
    %109 = vmatprep.subr.mxu0 0.0
    %110 = vmatpush1.msra.mxu0 0.0
    %111 = vmatprep.subr.mxu0 0.0
    %112 = vmatpush1.msra.mxu0 0.0
    %113 = vmatprep.subr.mxu0 0.0
    %114 = vmatpush1.msra.mxu0 0.0
    %115 = vmatprep.subr.mxu0 0.0
    %116 = vmatpush1.msra.mxu0 0.0
    %117 = vmatprep.subr.mxu0 0.0
    %118 = vmatpush1.msra.mxu0 0.0
    %119 = vmatprep.subr.mxu0 0.0
    %120 = vmatpush1.msra.mxu0 0.0
    %121 = vmatprep.subr.mxu0 0.0
    %122 = vmatpush1.msra.mxu0 0.0
    %123 = vmatprep.subr.mxu0 0.0
    %124 = vmatpush1.msra.mxu0 0.0
    %125 = vmatprep.subr.mxu0 0.0
    %126 = vmatpush1.msra.mxu0 0.0
    %127 = vmatprep.mubr.f32.mxu0 0.0
    %128 = vmatmul.mubr.f32.gmra.mrb[0].mxu0 %v61
    %v129 = vpop.f32.mrb[0].mxu0
    %v130 = vadd.f32 0.0, %v129
    %v131 = vpop.f32.mrb[0].mxu0
    %132 = vdwg.mxu0
    %v134 = vsel %vm59, %v45, 0
    %136 = vmatprep.subr.mxu0 0.0
    %137 = vmatpush1.msra.mxu0 %v51
    %138 = vmatprep.subr.mxu0 0.0
    %139 = vmatpush1.msra.mxu0 %v52
    %140 = vmatprep.subr.mxu0 0.0
    %141 = vmatpush1.msra.mxu0 %v53
    %142 = vmatprep.subr.mxu0 0.0
    %143 = vmatpush1.msra.mxu0 %v54
    %144 = vmatprep.subr.mxu0 0.0
    %145 = vmatpush1.msra.mxu0 0.0
    %146 = vmatprep.subr.mxu0 0.0
    %147 = vmatpush1.msra.mxu0 0.0
    %148 = vmatprep.subr.mxu0 0.0
    %149 = vmatpush1.msra.mxu0 0.0
    %150 = vmatprep.subr.mxu0 0.0
    %151 = vmatpush1.msra.mxu0 0.0
    %152 = vmatprep.subr.mxu0 0.0
    %153 = vmatpush1.msra.mxu0 0.0
    %154 = vmatprep.subr.mxu0 0.0
    %155 = vmatpush1.msra.mxu0 0.0
    %156 = vmatprep.subr.mxu0 0.0
    %157 = vmatpush1.msra.mxu0 0.0
    %158 = vmatprep.subr.mxu0 0.0
    %159 = vmatpush1.msra.mxu0 0.0
    %160 = vmatprep.subr.mxu0 0.0
    %161 = vmatpush1.msra.mxu0 0.0
    %162 = vmatprep.subr.mxu0 0.0
    %163 = vmatpush1.msra.mxu0 0.0
    %164 = vmatprep.subr.mxu0 0.0
    %165 = vmatpush1.msra.mxu0 0.0
    %166 = vmatprep.subr.mxu0 0.0
    %167 = vmatpush1.msra.mxu0 0.0
    %168 = vmatprep.subr.mxu0 0.0
    %169 = vmatpush1.msra.mxu0 0.0
    %170 = vmatprep.subr.mxu0 0.0
    %171 = vmatpush1.msra.mxu0 0.0
    %172 = vmatprep.subr.mxu0 0.0
    %173 = vmatpush1.msra.mxu0 0.0
    %174 = vmatprep.subr.mxu0 0.0
    %175 = vmatpush1.msra.mxu0 0.0
    %176 = vmatprep.subr.mxu0 0.0
    %177 = vmatpush1.msra.mxu0 0.0
    %178 = vmatprep.subr.mxu0 0.0
    %179 = vmatpush1.msra.mxu0 0.0
    %180 = vmatprep.subr.mxu0 0.0
    %181 = vmatpush1.msra.mxu0 0.0
    %182 = vmatprep.subr.mxu0 0.0
    %183 = vmatpush1.msra.mxu0 0.0
    %184 = vmatprep.subr.mxu0 0.0
    %185 = vmatpush1.msra.mxu0 0.0
    %186 = vmatprep.subr.mxu0 0.0
    %187 = vmatpush1.msra.mxu0 0.0
    %188 = vmatprep.subr.mxu0 0.0
    %189 = vmatpush1.msra.mxu0 0.0
    %190 = vmatprep.subr.mxu0 0.0
    %191 = vmatpush1.msra.mxu0 0.0
    %192 = vmatprep.subr.mxu0 0.0
    %193 = vmatpush1.msra.mxu0 0.0
    %194 = vmatprep.subr.mxu0 0.0
    %195 = vmatpush1.msra.mxu0 0.0
    %196 = vmatprep.subr.mxu0 0.0
    %197 = vmatpush1.msra.mxu0 0.0
    %198 = vmatprep.subr.mxu0 0.0
    %199 = vmatpush1.msra.mxu0 0.0
    %200 = vmatprep.mubr.f32.mxu0 0.0
    %201 = vmatmul.mubr.f32.gmra.mrb[0].mxu0 %v134
    %v202 = vpop.f32.mrb[0].mxu0
    %v203 = vadd.f32 %v130, %v202
    %v204 = vpop.f32.mrb[0].mxu0
    %205 = vdwg.mxu0
    %v206 = vld [vmem:[%s5] sm:$0x1]
    %v208 = vlaneseq
    %v209 = vshrl.u32 %v208, 7
    %v210 = vsub.s32 0, %v209
    %v211 = vrot.slane %v206, %v210
    %v213 = vadd.f32 %v203, %v211
    %vm214 = vcmask 58368
    %v215 = vsel %vm214, %v213, -inf
    %216 = vmax.xlane.f32.xlu0 %v215
    %v217 = vpop.xlane.xlu0 %216
    %v218 = vsub.f32 %v213, %v217
    %v219 = vmul.f32 %v218, 1.442695
    %v220 = vpow.pop %v219
    %v221 = vsel %vm214, %v220, 0.0
    %222 = vadd.xlane.f32.xlu0 %v221
    %v223 = vpop.xlane.xlu0 %222
    %v224 = vrcp.pop %v223
    %v225 = vmul.f32 %v223, %v224
    %v226 = vsub.f32 2.0, %v225
    %v227 = vmul.f32 %v224, %v226
    %v228 = vmul.f32 %v220, %v227
    %v229 = vld [vmem:[%s2] sm:$0xff]
    %v230 = vld [vmem:[%s2 + $0x8] sm:$0xff]
    %v233 = vunpack.c.l.s4 1966171168
    %v234 = vunpack.c.0.s8 %v233
    %v235 = vlaneseq
    %v236 = vshrl.u32 %v235, 7
    %v237 = vsub.s32 %v234, %v236
    %v238 = vrot.slane %v228, %v237
    %v239 = vcombine.high %v238, %v238
    %v241 = vunpack.c.l.s4 1966171168
    %v242 = vunpack.c.0.s8 %v241
    %v243 = vlaneseq
    %v244 = vshrl.u32 %v243, 7
    %v245 = vsub.s32 %v242, %v244
    %v246 = vrot.slane %v238, %v245
    %v248 = vunpack.c.l.s4 1966171168
    %v249 = vunpack.c.0.s8 %v248
    %v250 = vlaneseq
    %v251 = vshrl.u32 %v250, 7
    %v252 = vsub.s32 %v249, %v251
    %v253 = vrot.slane %v239, %v252
    %vm254 = vcmask 64512
    %v255 = vsel %vm254, %v246, 0
    %257 = vmatprep.subr.mxu0 0.0
    %258 = vmatpush1.msra.mxu0 %v229
    %259 = vmatprep.subr.mxu0 0.0
    %260 = vmatpush1.msra.mxu0 0.0
    %261 = vmatprep.subr.mxu0 0.0
    %262 = vmatpush1.msra.mxu0 0.0
    %263 = vmatprep.subr.mxu0 0.0
    %264 = vmatpush1.msra.mxu0 0.0
    %265 = vmatprep.subr.mxu0 0.0
    %266 = vmatpush1.msra.mxu0 0.0
    %267 = vmatprep.subr.mxu0 0.0
    %268 = vmatpush1.msra.mxu0 0.0
    %269 = vmatprep.subr.mxu0 0.0
    %270 = vmatpush1.msra.mxu0 0.0
    %271 = vmatprep.subr.mxu0 0.0
    %272 = vmatpush1.msra.mxu0 0.0
    %273 = vmatprep.subr.mxu0 0.0
    %274 = vmatpush1.msra.mxu0 0.0
    %275 = vmatprep.subr.mxu0 0.0
    %276 = vmatpush1.msra.mxu0 0.0
    %277 = vmatprep.subr.mxu0 0.0
    %278 = vmatpush1.msra.mxu0 0.0
    %279 = vmatprep.subr.mxu0 0.0
    %280 = vmatpush1.msra.mxu0 0.0
    %281 = vmatprep.subr.mxu0 0.0
    %282 = vmatpush1.msra.mxu0 0.0
    %283 = vmatprep.subr.mxu0 0.0
    %284 = vmatpush1.msra.mxu0 0.0
    %285 = vmatprep.subr.mxu0 0.0
    %286 = vmatpush1.msra.mxu0 0.0
    %287 = vmatprep.subr.mxu0 0.0
    %288 = vmatpush1.msra.mxu0 0.0
    %289 = vmatprep.subr.mxu0 0.0
    %290 = vmatpush1.msra.mxu0 0.0
    %291 = vmatprep.subr.mxu0 0.0
    %292 = vmatpush1.msra.mxu0 0.0
    %293 = vmatprep.subr.mxu0 0.0
    %294 = vmatpush1.msra.mxu0 0.0
    %295 = vmatprep.subr.mxu0 0.0
    %296 = vmatpush1.msra.mxu0 0.0
    %297 = vmatprep.subr.mxu0 0.0
    %298 = vmatpush1.msra.mxu0 0.0
    %299 = vmatprep.subr.mxu0 0.0
    %300 = vmatpush1.msra.mxu0 0.0
    %301 = vmatprep.subr.mxu0 0.0
    %302 = vmatpush1.msra.mxu0 0.0
    %303 = vmatprep.subr.mxu0 0.0
    %304 = vmatpush1.msra.mxu0 0.0
    %305 = vmatprep.subr.mxu0 0.0
    %306 = vmatpush1.msra.mxu0 0.0
    %307 = vmatprep.subr.mxu0 0.0
    %308 = vmatpush1.msra.mxu0 0.0
    %309 = vmatprep.subr.mxu0 0.0
    %310 = vmatpush1.msra.mxu0 0.0
    %311 = vmatprep.subr.mxu0 0.0
    %312 = vmatpush1.msra.mxu0 0.0
    %313 = vmatprep.subr.mxu0 0.0
    %314 = vmatpush1.msra.mxu0 0.0
    %315 = vmatprep.subr.mxu0 0.0
    %316 = vmatpush1.msra.mxu0 0.0
    %317 = vmatprep.subr.mxu0 0.0
    %318 = vmatpush1.msra.mxu0 0.0
    %319 = vmatprep.subr.mxu0 0.0
    %320 = vmatpush1.msra.mxu0 0.0
    %321 = vmatprep.mubr.f32.mxu0 0.0
    %322 = vmatmul.mubr.f32.gmra.mrb[0].mxu0 %v255
    %v323 = vpop.f32.mrb[0].mxu0
    %v324 = vadd.f32 0.0, %v323
    %v325 = vpop.f32.mrb[0].mxu0
    %326 = vdwg.mxu0
    %v327 = vsel %vm254, %v253, 0
    %329 = vmatprep.subr.mxu0 0.0
    %330 = vmatpush1.msra.mxu0 %v230
    %331 = vmatprep.subr.mxu0 0.0
    %332 = vmatpush1.msra.mxu0 0.0
    %333 = vmatprep.subr.mxu0 0.0
    %334 = vmatpush1.msra.mxu0 0.0
    %335 = vmatprep.subr.mxu0 0.0
    %336 = vmatpush1.msra.mxu0 0.0
    %337 = vmatprep.subr.mxu0 0.0
    %338 = vmatpush1.msra.mxu0 0.0
    %339 = vmatprep.subr.mxu0 0.0
    %340 = vmatpush1.msra.mxu0 0.0
    %341 = vmatprep.subr.mxu0 0.0
    %342 = vmatpush1.msra.mxu0 0.0
    %343 = vmatprep.subr.mxu0 0.0
    %344 = vmatpush1.msra.mxu0 0.0
    %345 = vmatprep.subr.mxu0 0.0
    %346 = vmatpush1.msra.mxu0 0.0
    %347 = vmatprep.subr.mxu0 0.0
    %348 = vmatpush1.msra.mxu0 0.0
    %349 = vmatprep.subr.mxu0 0.0
    %350 = vmatpush1.msra.mxu0 0.0
    %351 = vmatprep.subr.mxu0 0.0
    %352 = vmatpush1.msra.mxu0 0.0
    %353 = vmatprep.subr.mxu0 0.0
    %354 = vmatpush1.msra.mxu0 0.0
    %355 = vmatprep.subr.mxu0 0.0
    %356 = vmatpush1.msra.mxu0 0.0
    %357 = vmatprep.subr.mxu0 0.0
    %358 = vmatpush1.msra.mxu0 0.0
    %359 = vmatprep.subr.mxu0 0.0
    %360 = vmatpush1.msra.mxu0 0.0
    %361 = vmatprep.subr.mxu0 0.0
    %362 = vmatpush1.msra.mxu0 0.0
    %363 = vmatprep.subr.mxu0 0.0
    %364 = vmatpush1.msra.mxu0 0.0
    %365 = vmatprep.subr.mxu0 0.0
    %366 = vmatpush1.msra.mxu0 0.0
    %367 = vmatprep.subr.mxu0 0.0
    %368 = vmatpush1.msra.mxu0 0.0
    %369 = vmatprep.subr.mxu0 0.0
    %370 = vmatpush1.msra.mxu0 0.0
    %371 = vmatprep.subr.mxu0 0.0
    %372 = vmatpush1.msra.mxu0 0.0
    %373 = vmatprep.subr.mxu0 0.0
    %374 = vmatpush1.msra.mxu0 0.0
    %375 = vmatprep.subr.mxu0 0.0
    %376 = vmatpush1.msra.mxu0 0.0
    %377 = vmatprep.subr.mxu0 0.0
    %378 = vmatpush1.msra.mxu0 0.0
    %379 = vmatprep.subr.mxu0 0.0
    %380 = vmatpush1.msra.mxu0 0.0
    %381 = vmatprep.subr.mxu0 0.0
    %382 = vmatpush1.msra.mxu0 0.0
    %383 = vmatprep.subr.mxu0 0.0
    %384 = vmatpush1.msra.mxu0 0.0
    %385 = vmatprep.subr.mxu0 0.0
    %386 = vmatpush1.msra.mxu0 0.0
    %387 = vmatprep.subr.mxu0 0.0
    %388 = vmatpush1.msra.mxu0 0.0
    %389 = vmatprep.subr.mxu0 0.0
    %390 = vmatpush1.msra.mxu0 0.0
    %391 = vmatprep.subr.mxu0 0.0
    %392 = vmatpush1.msra.mxu0 0.0
    %393 = vmatprep.mubr.f32.mxu0 0.0
    %394 = vmatmul.mubr.f32.gmra.mrb[0].mxu0 %v327
    %v395 = vpop.f32.mrb[0].mxu0
    %v396 = vadd.f32 0.0, %v395
    %v397 = vpop.f32.mrb[0].mxu0
    %398 = vdwg.mxu0
    %v399 = vld [vmem:[%s7] sm:$0xff]
    %v400 = vld [vmem:[%s7 + $0x8] sm:$0xff]
    %v401 = vld [vmem:[%s7 + $0x10] sm:$0xff]
    %v402 = vld [vmem:[%s7 + $0x18] sm:$0xff]
    %v405 = vrot.slane %v396, 7
    %vm406 = vcmask 1041409
    %v407 = vsel %vm406, %v405, %v324
    %v408 = vsel %vm59, %v407, 0
    %410 = vmatprep.subr.mxu0 0.0
    %411 = vmatpush1.msra.mxu0 %v399
    %412 = vmatprep.subr.mxu0 0.0
    %413 = vmatpush1.msra.mxu0 %v400
    %414 = vmatprep.subr.mxu0 0.0
    %415 = vmatpush1.msra.mxu0 %v401
    %416 = vmatprep.subr.mxu0 0.0
    %417 = vmatpush1.msra.mxu0 %v402
    %418 = vmatprep.subr.mxu0 0.0
    %419 = vmatpush1.msra.mxu0 0.0
    %420 = vmatprep.subr.mxu0 0.0
    %421 = vmatpush1.msra.mxu0 0.0
    %422 = vmatprep.subr.mxu0 0.0
    %423 = vmatpush1.msra.mxu0 0.0
    %424 = vmatprep.subr.mxu0 0.0
    %425 = vmatpush1.msra.mxu0 0.0
    %426 = vmatprep.subr.mxu0 0.0
    %427 = vmatpush1.msra.mxu0 0.0
    %428 = vmatprep.subr.mxu0 0.0
    %429 = vmatpush1.msra.mxu0 0.0
    %430 = vmatprep.subr.mxu0 0.0
    %431 = vmatpush1.msra.mxu0 0.0
    %432 = vmatprep.subr.mxu0 0.0
    %433 = vmatpush1.msra.mxu0 0.0
    %434 = vmatprep.subr.mxu0 0.0
    %435 = vmatpush1.msra.mxu0 0.0
    %436 = vmatprep.subr.mxu0 0.0
    %437 = vmatpush1.msra.mxu0 0.0
    %438 = vmatprep.subr.mxu0 0.0
    %439 = vmatpush1.msra.mxu0 0.0
    %440 = vmatprep.subr.mxu0 0.0
    %441 = vmatpush1.msra.mxu0 0.0
    %442 = vmatprep.subr.mxu0 0.0
    %443 = vmatpush1.msra.mxu0 0.0
    %444 = vmatprep.subr.mxu0 0.0
    %445 = vmatpush1.msra.mxu0 0.0
    %446 = vmatprep.subr.mxu0 0.0
    %447 = vmatpush1.msra.mxu0 0.0
    %448 = vmatprep.subr.mxu0 0.0
    %449 = vmatpush1.msra.mxu0 0.0
    %450 = vmatprep.subr.mxu0 0.0
    %451 = vmatpush1.msra.mxu0 0.0
    %452 = vmatprep.subr.mxu0 0.0
    %453 = vmatpush1.msra.mxu0 0.0
    %454 = vmatprep.subr.mxu0 0.0
    %455 = vmatpush1.msra.mxu0 0.0
    %456 = vmatprep.subr.mxu0 0.0
    %457 = vmatpush1.msra.mxu0 0.0
    %458 = vmatprep.subr.mxu0 0.0
    %459 = vmatpush1.msra.mxu0 0.0
    %460 = vmatprep.subr.mxu0 0.0
    %461 = vmatpush1.msra.mxu0 0.0
    %462 = vmatprep.subr.mxu0 0.0
    %463 = vmatpush1.msra.mxu0 0.0
    %464 = vmatprep.subr.mxu0 0.0
    %465 = vmatpush1.msra.mxu0 0.0
    %466 = vmatprep.subr.mxu0 0.0
    %467 = vmatpush1.msra.mxu0 0.0
    %468 = vmatprep.subr.mxu0 0.0
    %469 = vmatpush1.msra.mxu0 0.0
    %470 = vmatprep.subr.mxu0 0.0
    %471 = vmatpush1.msra.mxu0 0.0
    %472 = vmatprep.subr.mxu0 0.0
    %473 = vmatpush1.msra.mxu0 0.0
    %474 = vmatprep.mubr.f32.mxu0 0.0
    %475 = vmatmul.mubr.f32.gmra.mrb[0].mxu0 %v408
    %v476 = vpop.f32.mrb[0].mxu0
    %v477 = vadd.f32 0.0, %v476
    %v478 = vpop.f32.mrb[0].mxu0
    %479 = vdwg.mxu0
    %480 = vmatprep.subr.mxu0 0.0
    %481 = vmatpush1.msra.mxu0 %v47
    %482 = vmatprep.subr.mxu0 0.0
    %483 = vmatpush1.msra.mxu0 %v48
    %484 = vmatprep.subr.mxu0 0.0
    %485 = vmatpush1.msra.mxu0 %v49
    %486 = vmatprep.subr.mxu0 0.0
    %487 = vmatpush1.msra.mxu0 %v50
    %488 = vmatprep.subr.mxu0 0.0
    %489 = vmatpush1.msra.mxu0 0.0
    %490 = vmatprep.subr.mxu0 0.0
    %491 = vmatpush1.msra.mxu0 0.0
    %492 = vmatprep.subr.mxu0 0.0
    %493 = vmatpush1.msra.mxu0 0.0
    %494 = vmatprep.subr.mxu0 0.0
    %495 = vmatpush1.msra.mxu0 0.0
    %496 = vmatprep.subr.mxu0 0.0
    %497 = vmatpush1.msra.mxu0 0.0
    %498 = vmatprep.subr.mxu0 0.0
    %499 = vmatpush1.msra.mxu0 0.0
    %500 = vmatprep.subr.mxu0 0.0
    %501 = vmatpush1.msra.mxu0 0.0
    %502 = vmatprep.subr.mxu0 0.0
    %503 = vmatpush1.msra.mxu0 0.0
    %504 = vmatprep.subr.mxu0 0.0
    %505 = vmatpush1.msra.mxu0 0.0
    %506 = vmatprep.subr.mxu0 0.0
    %507 = vmatpush1.msra.mxu0 0.0
    %508 = vmatprep.subr.mxu0 0.0
    %509 = vmatpush1.msra.mxu0 0.0
    %510 = vmatprep.subr.mxu0 0.0
    %511 = vmatpush1.msra.mxu0 0.0
    %512 = vmatprep.subr.mxu0 0.0
    %513 = vmatpush1.msra.mxu0 0.0
    %514 = vmatprep.subr.mxu0 0.0
    %515 = vmatpush1.msra.mxu0 0.0
    %516 = vmatprep.subr.mxu0 0.0
    %517 = vmatpush1.msra.mxu0 0.0
    %518 = vmatprep.subr.mxu0 0.0
    %519 = vmatpush1.msra.mxu0 0.0
    %520 = vmatprep.subr.mxu0 0.0
    %521 = vmatpush1.msra.mxu0 0.0
    %522 = vmatprep.subr.mxu0 0.0
    %523 = vmatpush1.msra.mxu0 0.0
    %524 = vmatprep.subr.mxu0 0.0
    %525 = vmatpush1.msra.mxu0 0.0
    %526 = vmatprep.subr.mxu0 0.0
    %527 = vmatpush1.msra.mxu0 0.0
    %528 = vmatprep.subr.mxu0 0.0
    %529 = vmatpush1.msra.mxu0 0.0
    %530 = vmatprep.subr.mxu0 0.0
    %531 = vmatpush1.msra.mxu0 0.0
    %532 = vmatprep.subr.mxu0 0.0
    %533 = vmatpush1.msra.mxu0 0.0
    %534 = vmatprep.subr.mxu0 0.0
    %535 = vmatpush1.msra.mxu0 0.0
    %536 = vmatprep.subr.mxu0 0.0
    %537 = vmatpush1.msra.mxu0 0.0
    %538 = vmatprep.subr.mxu0 0.0
    %539 = vmatpush1.msra.mxu0 0.0
    %540 = vmatprep.subr.mxu0 0.0
    %541 = vmatpush1.msra.mxu0 0.0
    %542 = vmatprep.subr.mxu0 0.0
    %543 = vmatpush1.msra.mxu0 0.0
    %544 = vmatprep.mubr.f32.mxu0 0.0
    %545 = vmatmul.mubr.f32.gmra.mrb[0].mxu0 %v134
    %v546 = vpop.f32.mrb[0].mxu0
    %v547 = vadd.f32 %v477, %v546
    %v548 = vpop.f32.mrb[0].mxu0
    %549 = vdwg.mxu0
    %v550 = vld [vmem:[%s8] sm:$0x1]
    %v552 = vlaneseq
    %v553 = vshrl.u32 %v552, 7
    %v554 = vsub.s32 0, %v553
    %v555 = vrot.slane %v550, %v554
    %v557 = vadd.f32 %v547, %v555
    %559 = vrot.lane.b32.xlu0 %v557, 8
    %v560 = vpop.permute.xlu0 %559
    %v562 = vsel %vm254, %v228, %v560
    %vm563 = vcmask 326656
    %v564 = vsel %vm563, %v562, 0.0
    %565 = vst [vmem:[#allocation5] sm:$0x3] %v564
    // Predicated region
    $region42: #{tpu_custom_call.1} parent=1 // pred_check
      _
    $region43: #{tpu_custom_call.1} parent=1 // pred_check_branch
      %567 = sbr.rel (0) target = $region45
    $region44: #{tpu_custom_call.1} parent=1 // pred_region
      %s569 = ssub.s32 32, 32
      %570 = vsyncadd [#allocation4], %s569
      %s572 = sshll.u32 [#allocation5], 4
      %s573 = int_to_ptr.vmem [resolvable:$true] %s572
      %575 = dma.vmem_to_hbm [thread:$0]  %s573, 32, %s9, [#allocation4]
    $region45: #{tpu_custom_call.1} parent=1 // pred_fallthru
      _
    // Predicated region
    $region46: #{tpu_custom_call.1} parent=1 // pred_check
      _
    $region47: #{tpu_custom_call.1} parent=1 // pred_check_branch
      %577 = sbr.rel (0) target = $region49
    $region48: #{tpu_custom_call.1} parent=1 // pred_region
      %578 = dma.done [#allocation4], 32
    $region49: #{tpu_custom_call.1} parent=1 // pred_fallthru
      _
    %579 = vsyncpa [#allocation3], 1
    %580 = vsyncpa [#allocation4], 1

</llo_original>
